<compile_context>
chip_gen: v7x
topology: tpu7x:2x2x1
jax: 0.10.0
libtpu: 0.0.40
codegen_flags: <defaults>
</compile_context>

<pallas_src>
from functools import partial

import jax
import jax.numpy as jnp
from jax import lax
from jax.experimental import pallas as pl
from jax.experimental.pallas import tpu as pltpu

# Synthetic small config (real model: NB_INPUT_JOINTS=52, num_neurons=512, latentD=32)
NUM_JOINTS = 8
LATENT_D = 32
NUM_NEURONS = 64

MATMUL_DTYPE = jnp.bfloat16  # MXU-native input dtype; accumulation stays f32.
TB_MAX = 512                 # max batch rows per grid step (sweep 512/1024 at large B)


def _round_up(n, m):
    return ((n + m - 1) // m) * m


def _cdiv(a, b):
    return -(-a // b)


def _choose_batch_tile(batch, tb_max=TB_MAX, min_rows_for_split=16):
    """Pick (TB, padded_batch): tiles <= tb_max, <8 padded rows per step for
    mid-size batches, and >=2 grid steps whenever there is enough work so the
    'parallel' grid axis can be sharded across v7x's two TensorCores."""
    rows = _round_up(batch, 8)
    n_steps = max(1, _cdiv(rows, tb_max))
    if n_steps == 1 and rows >= min_rows_for_split:
        n_steps = 2
    tb = _round_up(_cdiv(rows, n_steps), 8)
    return tb, tb * n_steps


# -----------------------------------------------------------------------------
# Fused kernel: MLP -> 6D rot repr -> rotation matrix -> unit quat -> rotvec.
#
# Layouts (per batch tile of TB rows, Jp = round_up(num_joints, 128)):
#   latent : (TB, latentD)                      batch on sublanes, feats on lanes
#   w3/b3  : pre-permuted & zero-padded so the MLP output is
#            (TB, 6*Jp) = [a1x | a2x | a1y | a2y | a1z | a2z]
#   out    : (TB, 12*Jp) = [m00 m01 m02 m10 m11 m12 m20 m21 m22 | rx ry rz]
# -----------------------------------------------------------------------------
def _pose_decoder_kernel(lat_ref, w1_ref, b1_ref, w2_ref, b2_ref, w3_ref, b3_ref,
                         out_ref):
    Jp = out_ref.shape[1] // 12

    def put(slot, val):
        # Static, lane-aligned slice of the output ref: zero-cost view, dense
        # unmasked stores (no concatenate temporaries, no extra vst pass).
        out_ref[:, slot * Jp:(slot + 1) * Jp] = val

    def leaky(x):
        return jnp.maximum(x, 0.2 * x)      # LeakyReLU(0.2)

    # ---- decoder MLP (bf16 matmuls, f32 accumulation on the MXU) ----
    x = lat_ref[...].astype(w1_ref.dtype)
    h = jnp.dot(x, w1_ref[...], preferred_element_type=jnp.float32) + b1_ref[...]
    h = leaky(h)
    # nn.Dropout(0.25) is the identity at inference time (module.eval()).
    h = jnp.dot(h.astype(w2_ref.dtype), w2_ref[...],
                preferred_element_type=jnp.float32) + b2_ref[...]
    h = leaky(h)
    y = jnp.dot(h.astype(w3_ref.dtype), w3_ref[...],
                preferred_element_type=jnp.float32) + b3_ref[...]   # (TB, 6*Jp)

    # ---- ContinousRotReprDecoder: Gram-Schmidt on dense (TB, Jp) tiles ----
    a1x = y[:, 0 * Jp:1 * Jp]
    a2x = y[:, 1 * Jp:2 * Jp]
    a1y = y[:, 2 * Jp:3 * Jp]
    a2y = y[:, 3 * Jp:4 * Jp]
    a1z = y[:, 4 * Jp:5 * Jp]
    a2z = y[:, 5 * Jp:6 * Jp]

    eps2 = 1e-24  # (F.normalize default eps = 1e-12)^2

    # b1 = normalize(a1): x / max(||x||, eps) == x * rsqrt(max(||x||^2, eps^2))
    inv_n1 = lax.rsqrt(jnp.maximum(a1x * a1x + a1y * a1y + a1z * a1z, eps2))
    b1x, b1y, b1z = a1x * inv_n1, a1y * inv_n1, a1z * inv_n1

    # b2 = normalize(a2 - <b1, a2> * b1)
    dot = b1x * a2x + b1y * a2y + b1z * a2z
    ux, uy, uz = a2x - dot * b1x, a2y - dot * b1y, a2z - dot * b1z
    inv_n2 = lax.rsqrt(jnp.maximum(ux * ux + uy * uy + uz * uz, eps2))
    b2x, b2y, b2z = ux * inv_n2, uy * inv_n2, uz * inv_n2

    # b3 = b1 x b2
    b3x = b1y * b2z - b1z * b2y
    b3y = b1z * b2x - b1x * b2z
    b3z = b1x * b2y - b1y * b2x

    # R = stack([b1, b2, b3], dim=-1): b1/b2/b3 are the COLUMNS of R.
    m00, m01, m02 = b1x, b2x, b3x
    m10, m11, m12 = b1y, b2y, b3y
    m20, m21, m22 = b1z, b2z, b3z

    # Row-major flattened R (matches .view(B, -1, 9)): slabs 0..8.
    put(0, m00); put(1, m01); put(2, m02)
    put(3, m10); put(4, m11); put(5, m12)
    put(6, m20); put(7, m21); put(8, m22)

    # ---- rotmat -> unit quaternion (xyzw), scipy/roma branch selection ----
    trace = m00 + m11 + m22
    c0 = (m00 >= m11) & (m00 >= m22) & (m00 >= trace)
    c1 = jnp.logical_not(c0) & (m11 >= m22) & (m11 >= trace)
    c2 = jnp.logical_not(c0) & jnp.logical_not(c1) & (m22 >= trace)

    # case 0 (i=0, j=1, k=2)
    q0x = 1.0 - trace + 2.0 * m00; q0y = m10 + m01; q0z = m20 + m02; q0w = m21 - m12
    # case 1 (i=1, j=2, k=0)
    q1y = 1.0 - trace + 2.0 * m11; q1z = m21 + m12; q1x = m01 + m10; q1w = m02 - m20
    # case 2 (i=2, j=0, k=1)
    q2z = 1.0 - trace + 2.0 * m22; q2x = m02 + m20; q2y = m12 + m21; q2w = m10 - m01
    # case 3 (trace largest)
    q3x = m21 - m12; q3y = m02 - m20; q3z = m10 - m01; q3w = 1.0 + trace

    qx = jnp.where(c0, q0x, jnp.where(c1, q1x, jnp.where(c2, q2x, q3x)))
    qy = jnp.where(c0, q0y, jnp.where(c1, q1y, jnp.where(c2, q2y, q3y)))
    qz = jnp.where(c0, q0z, jnp.where(c1, q1z, jnp.where(c2, q2z, q3z)))
    qw = jnp.where(c0, q0w, jnp.where(c1, q1w, jnp.where(c2, q2w, q3w)))

    inv_qn = lax.rsqrt(qx * qx + qy * qy + qz * qz + qw * qw)
    qx, qy, qz, qw = qx * inv_qn, qy * inv_qn, qz * inv_qn, qw * inv_qn

    # shortest-arc flip (roma.unitquat_to_rotvec, shortest_arc=True) -> qw >= 0
    sgn = jnp.where(qw < 0, -1.0, 1.0)
    qx, qy, qz, qw = qx * sgn, qy * sgn, qz * sgn, qw * sgn

    # ---- unit quat -> rotation vector, fully in-kernel ----
    # half = atan2(s, qw) with s, qw >= 0 lies in [0, pi/2]. Evaluate it via
    # three half-angle reductions + a degree-9 odd Taylor polynomial: only
    # mul/add/div/sqrt, all of which lower on Mosaic (no math.atan2 needed).
    s = jnp.sqrt(qx * qx + qy * qy + qz * qz)           # = sin(half) >= 0
    t = s / (1.0 + qw)                                  # tan(half/2)  in [0, 1]
    t = t / (1.0 + jnp.sqrt(1.0 + t * t))               # tan(half/4)  in [0, 0.415]
    t = t / (1.0 + jnp.sqrt(1.0 + t * t))               # tan(half/8)  in [0, 0.199]
    t2 = t * t
    atan_t = t * (1.0 + t2 * (-1.0 / 3.0 + t2 * (1.0 / 5.0 +
                    t2 * (-1.0 / 7.0 + t2 * (1.0 / 9.0)))))
    angle = 16.0 * atan_t                               # = 2 * atan2(s, qw)

    # roma/scipy small-angle series of angle/sin(angle/2); sin(angle/2) == s
    # exactly for a unit quaternion, so no sin() is needed on the large branch.
    small = angle <= 1e-3
    ang2 = angle * angle
    scale = jnp.where(
        small,
        2.0 + ang2 * (1.0 / 12.0) + ang2 * ang2 * (7.0 / 2880.0),
        angle / jnp.where(small, 1.0, s))

    put(9, scale * qx)
    put(10, scale * qy)
    put(11, scale * qz)


# -----------------------------------------------------------------------------
# Parameter init (PyTorch nn.Linear layout semantics) + kernel-ready packing.
# -----------------------------------------------------------------------------
def init_params(key, latentD=LATENT_D, num_neurons=NUM_NEURONS, num_joints=NUM_JOINTS):
    ks = jax.random.split(key, 6)

    def lin(kw, kb, fan_in, fan_out):
        bound = fan_in ** -0.5  # PyTorch default Linear init range
        w = jax.random.uniform(kw, (fan_in, fan_out), jnp.float32, -bound, bound)
        b = jax.random.uniform(kb, (1, fan_out), jnp.float32, -bound, bound)
        return w, b

    w1, b1 = lin(ks[0], ks[1], latentD, num_neurons)
    w2, b2 = lin(ks[2], ks[3], num_neurons, num_neurons)
    w3, b3 = lin(ks[4], ks[5], num_neurons, num_joints * 6)
    return dict(w1=w1, b1=b1, w2=w2, b2=b2, w3=w3, b3=b3)


def pack_params(params, num_joints, matmul_dtype=MATMUL_DTYPE):
    """One-time host-side prep: permute/pad w3 columns to component-major,
    lane-aligned slabs, and cast matmul weights to the MXU-native dtype."""
    J = num_joints
    Jp = _round_up(J, 128)
    w3, b3 = params["w3"], params["b3"]
    H = w3.shape[0]
    # original column o = j*6 + c  ->  packed column c*Jp + j  (zero pad j >= J)
    w3p = jnp.zeros((H, 6, Jp), jnp.float32).at[:, :, :J].set(
        jnp.transpose(w3.reshape(H, J, 6), (0, 2, 1))).reshape(H, 6 * Jp)
    b3p = jnp.zeros((1, 6, Jp), jnp.float32).at[:, :, :J].set(
        jnp.transpose(b3.reshape(1, J, 6), (0, 2, 1))).reshape(1, 6 * Jp)
    return {
        "w1": params["w1"].astype(matmul_dtype), "b1": params["b1"],
        "w2": params["w2"].astype(matmul_dtype), "b2": params["b2"],
        "w3": w3p.astype(matmul_dtype),          "b3": b3p,
    }


# -----------------------------------------------------------------------------
# Forward
# -----------------------------------------------------------------------------
@partial(jax.jit, static_argnames=("num_joints",))
def pose_decoder_forward(latent, params, *, num_joints):
    B, latentD = latent.shape
    H = params["w1"].shape[1]
    Jp = params["w3"].shape[1] // 6
    J = num_joints

    TB, Bp = _choose_batch_tile(B)
    if Bp != B:
        latent = jnp.pad(latent, ((0, Bp - B), (0, 0)))

    n_out = 12 * Jp  # [9 rotmat | 3 rotvec] slabs, one fused output DMA / step

    bytes_in = latent.size * latent.dtype.itemsize + sum(
        p.size * p.dtype.itemsize
        for p in (params["w1"], params["b1"], params["w2"], params["b2"],
                  params["w3"], params["b3"]))
    cost = pl.CostEstimate(
        flops=2 * Bp * (latentD * H + H * H + H * 6 * Jp) + 150 * Bp * Jp,
        transcendentals=10 * Bp * Jp,                    # rsqrt / sqrt lanes
        bytes_accessed=bytes_in + Bp * n_out * 4)

    out = pl.pallas_call(
        _pose_decoder_kernel,
        out_shape=jax.ShapeDtypeStruct((Bp, n_out), jnp.float32),
        grid=(Bp // TB,),
        in_specs=[
            pl.BlockSpec((TB, latentD), lambda i: (i, 0)),   # latent (batch-tiled)
            # Weights/biases: constant index_map -> fetched once, kept resident.
            # (Single-buffering them is a ~1 MiB nicety we skip: total VMEM use
            #  is ~9 MiB << the 32 MiB limit.)
            pl.BlockSpec((latentD, H), lambda i: (0, 0)),    # w1
            pl.BlockSpec((1, H), lambda i: (0, 0)),          # b1
            pl.BlockSpec((H, H), lambda i: (0, 0)),          # w2
            pl.BlockSpec((1, H), lambda i: (0, 0)),          # b2
            pl.BlockSpec((H, 6 * Jp), lambda i: (0, 0)),     # w3 (packed)
            pl.BlockSpec((1, 6 * Jp), lambda i: (0, 0)),     # b3 (packed)
        ],
        out_specs=pl.BlockSpec((TB, n_out), lambda i: (i, 0)),
        compiler_params=pltpu.CompilerParams(
            dimension_semantics=("parallel",),               # megacore on v7x
            vmem_limit_bytes=32 * 1024 * 1024,               # explicit, v5e/v7x-safe
        ),
        cost_estimate=cost,
    )(latent, params["w1"], params["b1"], params["w2"], params["b2"],
      params["w3"], params["b3"])

    body = out[:B]
    # TODO(synk): the two transposes below are pure-layout XLA copies kept only
    # to honor the PyTorch (B, J, 9)/(B, J, 3) output contract; consumers able
    # to read the component-major (B, 12*Jp) slabs directly can skip them.
    pose_body_matrot = jnp.transpose(
        body[:, :9 * Jp].reshape(B, 9, Jp)[:, :, :J], (0, 2, 1))        # (B, J, 9)
    pose_body = jnp.transpose(
        body[:, 9 * Jp:].reshape(B, 3, Jp)[:, :, :J], (0, 2, 1))        # (B, J, 3)

    return {"pose_body": pose_body, "pose_body_matrot": pose_body_matrot}


# -----------------------------------------------------------------------------
# Pure-JAX reference (mirrors the PyTorch module op-for-op, same bf16 rounding)
# -----------------------------------------------------------------------------
def reference_forward(latent, raw_params, num_joints, matmul_dtype=MATMUL_DTYPE):
    B, J = latent.shape[0], num_joints
    w1 = raw_params["w1"].astype(matmul_dtype); b1 = raw_params["b1"]
    w2 = raw_params["w2"].astype(matmul_dtype); b2 = raw_params["b2"]
    w3 = raw_params["w3"].astype(matmul_dtype); b3 = raw_params["b3"]

    def leaky(x):
        return jnp.maximum(x, 0.2 * x)

    h = leaky(jnp.dot(latent.astype(matmul_dtype), w1,
                      preferred_element_type=jnp.float32) + b1)
    h = leaky(jnp.dot(h.astype(matmul_dtype), w2,
                      preferred_element_type=jnp.float32) + b2)
    y = jnp.dot(h.astype(matmul_dtype), w3,
                preferred_element_type=jnp.float32) + b3              # (B, J*6)

    a = y.reshape(-1, 3, 2)

    def normalize(v):
        return v * lax.rsqrt(jnp.maximum(jnp.sum(v * v, -1, keepdims=True), 1e-24))

    b1v = normalize(a[:, :, 0])
    dotp = jnp.sum(b1v * a[:, :, 1], -1, keepdims=True)
    b2v = normalize(a[:, :, 1] - dotp * b1v)
    b3v = jnp.cross(b1v, b2v)
    R = jnp.stack([b1v, b2v, b3v], axis=-1)                           # (B*J, 3, 3)
    matrot = R.reshape(B, J, 9)

    m = R
    trace = m[:, 0, 0] + m[:, 1, 1] + m[:, 2, 2]
    diag = jnp.stack([m[:, 0, 0], m[:, 1, 1], m[:, 2, 2], trace], -1)
    choice = jnp.argmax(diag, axis=-1)

    def case(i):
        j, k = (i + 1) % 3, (i + 2) % 3
        q = [None] * 4
        q[i] = 1.0 - trace + 2.0 * m[:, i, i]
        q[j] = m[:, j, i] + m[:, i, j]
        q[k] = m[:, k, i] + m[:, i, k]
        q[3] = m[:, k, j] - m[:, j, k]
        return jnp.stack(q, -1)

    qcase3 = jnp.stack([m[:, 2, 1] - m[:, 1, 2], m[:, 0, 2] - m[:, 2, 0],
                        m[:, 1, 0] - m[:, 0, 1], 1.0 + trace], -1)
    quat = jnp.where((choice == 0)[:, None], case(0),
            jnp.where((choice == 1)[:, None], case(1),
             jnp.where((choice == 2)[:, None], case(2), qcase3)))
    quat = quat / jnp.linalg.norm(quat, axis=-1, keepdims=True)
    quat = jnp.where(quat[:, 3:4] < 0, -quat, quat)                   # shortest arc

    sn = jnp.linalg.norm(quat[:, :3], axis=-1)
    angle = 2.0 * jnp.arctan2(sn, quat[:, 3])
    small = angle <= 1e-3
    scale = jnp.where(small,
                      2.0 + angle ** 2 / 12.0 + 7.0 * angle ** 4 / 2880.0,
                      angle / jnp.where(small, 1.0, jnp.sin(angle / 2.0)))
    rotvec = (scale[:, None] * quat[:, :3]).reshape(B, J, 3)
    return {"pose_body": rotvec, "pose_body_matrot": matrot}


if __name__ == "__main__":
    key = jax.random.PRNGKey(0)
    k_lat, k_par = jax.random.split(key)
    latent = jax.random.normal(k_lat, (2, LATENT_D), dtype=jnp.float32)

    raw_params = init_params(k_par)
    params = pack_params(raw_params, NUM_JOINTS)

    out = pose_decoder_forward(latent, params, num_joints=NUM_JOINTS)
    jax.block_until_ready(out)

    assert out["pose_body"].shape == (2, NUM_JOINTS, 3)
    assert out["pose_body_matrot"].shape == (2, NUM_JOINTS, 9)
    assert bool(jnp.all(jnp.isfinite(out["pose_body"])))
    assert bool(jnp.all(jnp.isfinite(out["pose_body_matrot"])))

    # Sanity: produced matrices are (numerically) rotation matrices.
    R = out["pose_body_matrot"].reshape(-1, 3, 3)
    rtr = jnp.einsum("nij,nkj->nik", R, R)
    assert bool(jnp.max(jnp.abs(rtr - jnp.eye(3))) < 1e-3)

    # Match a pure-JAX reference (same bf16 weight rounding, true arctan2/sin):
    # also validates the w3 packing and the in-kernel atan2 approximation.
    ref = reference_forward(latent, raw_params, NUM_JOINTS)
    assert bool(jnp.max(jnp.abs(out["pose_body_matrot"] - ref["pose_body_matrot"])) < 5e-3)
    assert bool(jnp.max(jnp.abs(out["pose_body"] - ref["pose_body"])) < 5e-3)

    print("KERNEL_OK")
</pallas_src>

<mosaic_0001>
module attributes {stable_mosaic.version = 11 : i64} {
  func.func @_pose_decoder_kernel(%arg0: i32, %arg1: memref<8x32xf32, #tpu.memory_space<vmem>>, %arg2: memref<32x64xbf16, #tpu.memory_space<vmem>>, %arg3: memref<1x64xf32, #tpu.memory_space<vmem>>, %arg4: memref<64x64xbf16, #tpu.memory_space<vmem>>, %arg5: memref<1x64xf32, #tpu.memory_space<vmem>>, %arg6: memref<64x768xbf16, #tpu.memory_space<vmem>>, %arg7: memref<1x768xf32, #tpu.memory_space<vmem>>, %arg8: memref<8x1536xf32, #tpu.memory_space<vmem>>) attributes {dimension_semantics = [#tpu.dimension_semantics<parallel>], iteration_bounds = array<i64: 1>, scalar_prefetch = 0 : i64, scratch_operands = 0 : i64, tpu.core_type = #tpu.core_type<tc>, window_params = [{transform_indices = @transform_0, window_bounds = array<i64: 8, 32>}, {pipeline_mode = #tpu.pipeline_mode<synchronous>, transform_indices = @transform_1, window_bounds = array<i64: 32, 64>}, {pipeline_mode = #tpu.pipeline_mode<synchronous>, transform_indices = @transform_2, window_bounds = array<i64: 1, 64>}, {pipeline_mode = #tpu.pipeline_mode<synchronous>, transform_indices = @transform_3, window_bounds = array<i64: 64, 64>}, {pipeline_mode = #tpu.pipeline_mode<synchronous>, transform_indices = @transform_4, window_bounds = array<i64: 1, 64>}, {pipeline_mode = #tpu.pipeline_mode<synchronous>, transform_indices = @transform_5, window_bounds = array<i64: 64, 768>}, {pipeline_mode = #tpu.pipeline_mode<synchronous>, transform_indices = @transform_6, window_bounds = array<i64: 1, 768>}, {transform_indices = @transform_7, window_bounds = array<i64: 8, 1536>}]} {
    %c0 = arith.constant 0 : index
    %c0_0 = arith.constant 0 : index
    %0 = vector.load %arg1[%c0, %c0_0] : memref<8x32xf32, #tpu.memory_space<vmem>>, vector<8x32xf32>
    %1 = arith.truncf %0 : vector<8x32xf32> to vector<8x32xbf16>
    %c0_1 = arith.constant 0 : index
    %c0_2 = arith.constant 0 : index
    %2 = vector.load %arg2[%c0_1, %c0_2] : memref<32x64xbf16, #tpu.memory_space<vmem>>, vector<32x64xbf16>
    %cst = arith.constant dense<0.000000e+00> : vector<8x64xf32>
    %3 = tpu.matmul %1, %2, %cst {dimension_numbers = #tpu.dot_dimension_numbers<[1], [0], [0], [1], [0, 0, 1, 1], [], []>} : vector<8x32xbf16>, vector<32x64xbf16>, vector<8x64xf32> -> vector<8x64xf32>
    %c0_3 = arith.constant 0 : index
    %c0_4 = arith.constant 0 : index
    %4 = vector.load %arg3[%c0_3, %c0_4] : memref<1x64xf32, #tpu.memory_space<vmem>>, vector<1x64xf32>
    %5 = vector.broadcast %4 : vector<1x64xf32> to vector<8x64xf32>
    %6 = arith.addf %3, %5 : vector<8x64xf32>
    %cst_5 = arith.constant 2.000000e-01 : f32
    %7 = vector.broadcast %cst_5 : f32 to vector<8x64xf32>
    %8 = arith.mulf %7, %6 : vector<8x64xf32>
    %9 = arith.maximumf %6, %8 : vector<8x64xf32>
    %10 = arith.truncf %9 : vector<8x64xf32> to vector<8x64xbf16>
    %c0_6 = arith.constant 0 : index
    %c0_7 = arith.constant 0 : index
    %11 = vector.load %arg4[%c0_6, %c0_7] : memref<64x64xbf16, #tpu.memory_space<vmem>>, vector<64x64xbf16>
    %cst_8 = arith.constant dense<0.000000e+00> : vector<8x64xf32>
    %12 = tpu.matmul %10, %11, %cst_8 {dimension_numbers = #tpu.dot_dimension_numbers<[1], [0], [0], [1], [0, 0, 1, 1], [], []>} : vector<8x64xbf16>, vector<64x64xbf16>, vector<8x64xf32> -> vector<8x64xf32>
    %c0_9 = arith.constant 0 : index
    %c0_10 = arith.constant 0 : index
    %13 = vector.load %arg5[%c0_9, %c0_10] : memref<1x64xf32, #tpu.memory_space<vmem>>, vector<1x64xf32>
    %14 = vector.broadcast %13 : vector<1x64xf32> to vector<8x64xf32>
    %15 = arith.addf %12, %14 : vector<8x64xf32>
    %cst_11 = arith.constant 2.000000e-01 : f32
    %16 = vector.broadcast %cst_11 : f32 to vector<8x64xf32>
    %17 = arith.mulf %16, %15 : vector<8x64xf32>
    %18 = arith.maximumf %15, %17 : vector<8x64xf32>
    %19 = arith.truncf %18 : vector<8x64xf32> to vector<8x64xbf16>
    %c0_12 = arith.constant 0 : index
    %c0_13 = arith.constant 0 : index
    %20 = vector.load %arg6[%c0_12, %c0_13] : memref<64x768xbf16, #tpu.memory_space<vmem>>, vector<64x768xbf16>
    %cst_14 = arith.constant dense<0.000000e+00> : vector<8x768xf32>
    %21 = tpu.matmul %19, %20, %cst_14 {dimension_numbers = #tpu.dot_dimension_numbers<[1], [0], [0], [1], [0, 0, 1, 1], [], []>} : vector<8x64xbf16>, vector<64x768xbf16>, vector<8x768xf32> -> vector<8x768xf32>
    %c0_15 = arith.constant 0 : index
    %c0_16 = arith.constant 0 : index
    %22 = vector.load %arg7[%c0_15, %c0_16] : memref<1x768xf32, #tpu.memory_space<vmem>>, vector<1x768xf32>
    %23 = vector.broadcast %22 : vector<1x768xf32> to vector<8x768xf32>
    %24 = arith.addf %21, %23 : vector<8x768xf32>
    %25 = vector.extract_strided_slice %24 {offsets = [0, 0], sizes = [8, 128], strides = [1, 1]} : vector<8x768xf32> to vector<8x128xf32>
    %26 = vector.extract_strided_slice %24 {offsets = [0, 128], sizes = [8, 128], strides = [1, 1]} : vector<8x768xf32> to vector<8x128xf32>
    %27 = vector.extract_strided_slice %24 {offsets = [0, 256], sizes = [8, 128], strides = [1, 1]} : vector<8x768xf32> to vector<8x128xf32>
    %28 = vector.extract_strided_slice %24 {offsets = [0, 384], sizes = [8, 128], strides = [1, 1]} : vector<8x768xf32> to vector<8x128xf32>
    %29 = vector.extract_strided_slice %24 {offsets = [0, 512], sizes = [8, 128], strides = [1, 1]} : vector<8x768xf32> to vector<8x128xf32>
    %30 = vector.extract_strided_slice %24 {offsets = [0, 640], sizes = [8, 128], strides = [1, 1]} : vector<8x768xf32> to vector<8x128xf32>
    %31 = arith.mulf %25, %25 : vector<8x128xf32>
    %32 = arith.mulf %27, %27 : vector<8x128xf32>
    %33 = arith.addf %31, %32 : vector<8x128xf32>
    %34 = arith.mulf %29, %29 : vector<8x128xf32>
    %35 = arith.addf %33, %34 : vector<8x128xf32>
    %cst_17 = arith.constant 1.000000e-24 : f32
    %36 = vector.broadcast %cst_17 : f32 to vector<8x128xf32>
    %37 = arith.maximumf %35, %36 : vector<8x128xf32>
    %38 = math.rsqrt %37 : vector<8x128xf32>
    %39 = arith.mulf %25, %38 : vector<8x128xf32>
    %40 = arith.mulf %27, %38 : vector<8x128xf32>
    %41 = arith.mulf %29, %38 : vector<8x128xf32>
    %42 = arith.mulf %39, %26 : vector<8x128xf32>
    %43 = arith.mulf %40, %28 : vector<8x128xf32>
    %44 = arith.addf %42, %43 : vector<8x128xf32>
    %45 = arith.mulf %41, %30 : vector<8x128xf32>
    %46 = arith.addf %44, %45 : vector<8x128xf32>
    %47 = arith.mulf %46, %39 : vector<8x128xf32>
    %48 = arith.subf %26, %47 : vector<8x128xf32>
    %49 = arith.mulf %46, %40 : vector<8x128xf32>
    %50 = arith.subf %28, %49 : vector<8x128xf32>
    %51 = arith.mulf %46, %41 : vector<8x128xf32>
    %52 = arith.subf %30, %51 : vector<8x128xf32>
    %53 = arith.mulf %48, %48 : vector<8x128xf32>
    %54 = arith.mulf %50, %50 : vector<8x128xf32>
    %55 = arith.addf %53, %54 : vector<8x128xf32>
    %56 = arith.mulf %52, %52 : vector<8x128xf32>
    %57 = arith.addf %55, %56 : vector<8x128xf32>
    %cst_18 = arith.constant 1.000000e-24 : f32
    %58 = vector.broadcast %cst_18 : f32 to vector<8x128xf32>
    %59 = arith.maximumf %57, %58 : vector<8x128xf32>
    %60 = math.rsqrt %59 : vector<8x128xf32>
    %61 = arith.mulf %48, %60 : vector<8x128xf32>
    %62 = arith.mulf %50, %60 : vector<8x128xf32>
    %63 = arith.mulf %52, %60 : vector<8x128xf32>
    %64 = arith.mulf %40, %63 : vector<8x128xf32>
    %65 = arith.mulf %41, %62 : vector<8x128xf32>
    %66 = arith.subf %64, %65 : vector<8x128xf32>
    %67 = arith.mulf %41, %61 : vector<8x128xf32>
    %68 = arith.mulf %39, %63 : vector<8x128xf32>
    %69 = arith.subf %67, %68 : vector<8x128xf32>
    %70 = arith.mulf %39, %62 : vector<8x128xf32>
    %71 = arith.mulf %40, %61 : vector<8x128xf32>
    %72 = arith.subf %70, %71 : vector<8x128xf32>
    %c0_19 = arith.constant 0 : index
    %c0_20 = arith.constant 0 : index
    %73 = vector.load %arg8[%c0_19, %c0_20] : memref<8x1536xf32, #tpu.memory_space<vmem>>, vector<8x128xf32>
    tpu.vector_store %arg8[%c0_19, %c0_20], %39 {strides = array<i32>} : memref<8x1536xf32, #tpu.memory_space<vmem>>, vector<8x128xf32>,
    %c0_21 = arith.constant 0 : index
    %c128 = arith.constant 128 : index
    %74 = vector.load %arg8[%c0_21, %c128] : memref<8x1536xf32, #tpu.memory_space<vmem>>, vector<8x128xf32>
    tpu.vector_store %arg8[%c0_21, %c128], %61 {strides = array<i32>} : memref<8x1536xf32, #tpu.memory_space<vmem>>, vector<8x128xf32>,
    %c0_22 = arith.constant 0 : index
    %c256 = arith.constant 256 : index
    %75 = vector.load %arg8[%c0_22, %c256] : memref<8x1536xf32, #tpu.memory_space<vmem>>, vector<8x128xf32>
    tpu.vector_store %arg8[%c0_22, %c256], %66 {strides = array<i32>} : memref<8x1536xf32, #tpu.memory_space<vmem>>, vector<8x128xf32>,
    %c0_23 = arith.constant 0 : index
    %c384 = arith.constant 384 : index
    %76 = vector.load %arg8[%c0_23, %c384] : memref<8x1536xf32, #tpu.memory_space<vmem>>, vector<8x128xf32>
    tpu.vector_store %arg8[%c0_23, %c384], %40 {strides = array<i32>} : memref<8x1536xf32, #tpu.memory_space<vmem>>, vector<8x128xf32>,
    %c0_24 = arith.constant 0 : index
    %c512 = arith.constant 512 : index
    %77 = vector.load %arg8[%c0_24, %c512] : memref<8x1536xf32, #tpu.memory_space<vmem>>, vector<8x128xf32>
    tpu.vector_store %arg8[%c0_24, %c512], %62 {strides = array<i32>} : memref<8x1536xf32, #tpu.memory_space<vmem>>, vector<8x128xf32>,
    %c0_25 = arith.constant 0 : index
    %c640 = arith.constant 640 : index
    %78 = vector.load %arg8[%c0_25, %c640] : memref<8x1536xf32, #tpu.memory_space<vmem>>, vector<8x128xf32>
    tpu.vector_store %arg8[%c0_25, %c640], %69 {strides = array<i32>} : memref<8x1536xf32, #tpu.memory_space<vmem>>, vector<8x128xf32>,
    %c0_26 = arith.constant 0 : index
    %c768 = arith.constant 768 : index
    %79 = vector.load %arg8[%c0_26, %c768] : memref<8x1536xf32, #tpu.memory_space<vmem>>, vector<8x128xf32>
    tpu.vector_store %arg8[%c0_26, %c768], %41 {strides = array<i32>} : memref<8x1536xf32, #tpu.memory_space<vmem>>, vector<8x128xf32>,
    %c0_27 = arith.constant 0 : index
    %c896 = arith.constant 896 : index
    %80 = vector.load %arg8[%c0_27, %c896] : memref<8x1536xf32, #tpu.memory_space<vmem>>, vector<8x128xf32>
    tpu.vector_store %arg8[%c0_27, %c896], %63 {strides = array<i32>} : memref<8x1536xf32, #tpu.memory_space<vmem>>, vector<8x128xf32>,
    %c0_28 = arith.constant 0 : index
    %c1024 = arith.constant 1024 : index
    %81 = vector.load %arg8[%c0_28, %c1024] : memref<8x1536xf32, #tpu.memory_space<vmem>>, vector<8x128xf32>
    tpu.vector_store %arg8[%c0_28, %c1024], %72 {strides = array<i32>} : memref<8x1536xf32, #tpu.memory_space<vmem>>, vector<8x128xf32>,
    %82 = arith.addf %39, %62 : vector<8x128xf32>
    %83 = arith.addf %82, %72 : vector<8x128xf32>
    %84 = arith.cmpf oge, %39, %62 : vector<8x128xf32>
    %85 = arith.cmpf oge, %39, %72 : vector<8x128xf32>
    %86 = arith.andi %84, %85 : vector<8x128xi1>
    %87 = arith.cmpf oge, %39, %83 : vector<8x128xf32>
    %88 = arith.andi %86, %87 : vector<8x128xi1>
    %cst_29 = arith.constant dense<true> : vector<8x128xi1>
    %89 = arith.xori %88, %cst_29 : vector<8x128xi1>
    %90 = arith.cmpf oge, %62, %72 : vector<8x128xf32>
    %91 = arith.andi %89, %90 : vector<8x128xi1>
    %92 = arith.cmpf oge, %62, %83 : vector<8x128xf32>
    %93 = arith.andi %91, %92 : vector<8x128xi1>
    %cst_30 = arith.constant dense<true> : vector<8x128xi1>
    %94 = arith.xori %88, %cst_30 : vector<8x128xi1>
    %cst_31 = arith.constant dense<true> : vector<8x128xi1>
    %95 = arith.xori %93, %cst_31 : vector<8x128xi1>
    %96 = arith.andi %94, %95 : vector<8x128xi1>
    %97 = arith.cmpf oge, %72, %83 : vector<8x128xf32>
    %98 = arith.andi %96, %97 : vector<8x128xi1>
    %cst_32 = arith.constant 1.000000e+00 : f32
    %99 = vector.broadcast %cst_32 : f32 to vector<8x128xf32>
    %100 = arith.subf %99, %83 : vector<8x128xf32>
    %cst_33 = arith.constant 2.000000e+00 : f32
    %101 = vector.broadcast %cst_33 : f32 to vector<8x128xf32>
    %102 = arith.mulf %101, %39 : vector<8x128xf32>
    %103 = arith.addf %100, %102 : vector<8x128xf32>
    %104 = arith.addf %40, %61 : vector<8x128xf32>
    %105 = arith.addf %41, %66 : vector<8x128xf32>
    %106 = arith.subf %63, %69 : vector<8x128xf32>
    %cst_34 = arith.constant 1.000000e+00 : f32
    %107 = vector.broadcast %cst_34 : f32 to vector<8x128xf32>
    %108 = arith.subf %107, %83 : vector<8x128xf32>
    %cst_35 = arith.constant 2.000000e+00 : f32
    %109 = vector.broadcast %cst_35 : f32 to vector<8x128xf32>
    %110 = arith.mulf %109, %62 : vector<8x128xf32>
    %111 = arith.addf %108, %110 : vector<8x128xf32>
    %112 = arith.addf %63, %69 : vector<8x128xf32>
    %113 = arith.addf %61, %40 : vector<8x128xf32>
    %114 = arith.subf %66, %41 : vector<8x128xf32>
    %cst_36 = arith.constant 1.000000e+00 : f32
    %115 = vector.broadcast %cst_36 : f32 to vector<8x128xf32>
    %116 = arith.subf %115, %83 : vector<8x128xf32>
    %cst_37 = arith.constant 2.000000e+00 : f32
    %117 = vector.broadcast %cst_37 : f32 to vector<8x128xf32>
    %118 = arith.mulf %117, %72 : vector<8x128xf32>
    %119 = arith.addf %116, %118 : vector<8x128xf32>
    %120 = arith.addf %66, %41 : vector<8x128xf32>
    %121 = arith.addf %69, %63 : vector<8x128xf32>
    %122 = arith.subf %40, %61 : vector<8x128xf32>
    %123 = arith.subf %63, %69 : vector<8x128xf32>
    %124 = arith.subf %66, %41 : vector<8x128xf32>
    %125 = arith.subf %40, %61 : vector<8x128xf32>
    %cst_38 = arith.constant 1.000000e+00 : f32
    %126 = vector.broadcast %cst_38 : f32 to vector<8x128xf32>
    %127 = arith.addf %126, %83 : vector<8x128xf32>
    %128 = arith.select %98, %120, %123 : vector<8x128xi1>, vector<8x128xf32>
    %129 = arith.select %93, %113, %128 : vector<8x128xi1>, vector<8x128xf32>
    %130 = arith.select %88, %103, %129 : vector<8x128xi1>, vector<8x128xf32>
    %131 = arith.select %98, %121, %124 : vector<8x128xi1>, vector<8x128xf32>
    %132 = arith.select %93, %111, %131 : vector<8x128xi1>, vector<8x128xf32>
    %133 = arith.select %88, %104, %132 : vector<8x128xi1>, vector<8x128xf32>
    %134 = arith.select %98, %119, %125 : vector<8x128xi1>, vector<8x128xf32>
    %135 = arith.select %93, %112, %134 : vector<8x128xi1>, vector<8x128xf32>
    %136 = arith.select %88, %105, %135 : vector<8x128xi1>, vector<8x128xf32>
    %137 = arith.select %98, %122, %127 : vector<8x128xi1>, vector<8x128xf32>
    %138 = arith.select %93, %114, %137 : vector<8x128xi1>, vector<8x128xf32>
    %139 = arith.select %88, %106, %138 : vector<8x128xi1>, vector<8x128xf32>
    %140 = arith.mulf %130, %130 : vector<8x128xf32>
    %141 = arith.mulf %133, %133 : vector<8x128xf32>
    %142 = arith.addf %140, %141 : vector<8x128xf32>
    %143 = arith.mulf %136, %136 : vector<8x128xf32>
    %144 = arith.addf %142, %143 : vector<8x128xf32>
    %145 = arith.mulf %139, %139 : vector<8x128xf32>
    %146 = arith.addf %144, %145 : vector<8x128xf32>
    %147 = math.rsqrt %146 : vector<8x128xf32>
    %148 = arith.mulf %130, %147 : vector<8x128xf32>
    %149 = arith.mulf %133, %147 : vector<8x128xf32>
    %150 = arith.mulf %136, %147 : vector<8x128xf32>
    %151 = arith.mulf %139, %147 : vector<8x128xf32>
    %cst_39 = arith.constant 0.000000e+00 : f32
    %152 = vector.broadcast %cst_39 : f32 to vector<8x128xf32>
    %153 = arith.cmpf olt, %151, %152 : vector<8x128xf32>
    %cst_40 = arith.constant -1.000000e+00 : f32
    %cst_41 = arith.constant 1.000000e+00 : f32
    %154 = vector.broadcast %cst_40 : f32 to vector<8x128xf32>
    %155 = vector.broadcast %cst_41 : f32 to vector<8x128xf32>
    %156 = arith.select %153, %154, %155 : vector<8x128xi1>, vector<8x128xf32>
    %157 = arith.mulf %148, %156 : vector<8x128xf32>
    %158 = arith.mulf %149, %156 : vector<8x128xf32>
    %159 = arith.mulf %150, %156 : vector<8x128xf32>
    %160 = arith.mulf %151, %156 : vector<8x128xf32>
    %161 = arith.mulf %157, %157 : vector<8x128xf32>
    %162 = arith.mulf %158, %158 : vector<8x128xf32>
    %163 = arith.addf %161, %162 : vector<8x128xf32>
    %164 = arith.mulf %159, %159 : vector<8x128xf32>
    %165 = arith.addf %163, %164 : vector<8x128xf32>
    %166 = math.sqrt %165 : vector<8x128xf32>
    %cst_42 = arith.constant 1.000000e+00 : f32
    %167 = vector.broadcast %cst_42 : f32 to vector<8x128xf32>
    %168 = arith.addf %167, %160 : vector<8x128xf32>
    %169 = arith.divf %166, %168 : vector<8x128xf32>
    %170 = arith.mulf %169, %169 : vector<8x128xf32>
    %cst_43 = arith.constant 1.000000e+00 : f32
    %171 = vector.broadcast %cst_43 : f32 to vector<8x128xf32>
    %172 = arith.addf %171, %170 : vector<8x128xf32>
    %173 = math.sqrt %172 : vector<8x128xf32>
    %cst_44 = arith.constant 1.000000e+00 : f32
    %174 = vector.broadcast %cst_44 : f32 to vector<8x128xf32>
    %175 = arith.addf %174, %173 : vector<8x128xf32>
    %176 = arith.divf %169, %175 : vector<8x128xf32>
    %177 = arith.mulf %176, %176 : vector<8x128xf32>
    %cst_45 = arith.constant 1.000000e+00 : f32
    %178 = vector.broadcast %cst_45 : f32 to vector<8x128xf32>
    %179 = arith.addf %178, %177 : vector<8x128xf32>
    %180 = math.sqrt %179 : vector<8x128xf32>
    %cst_46 = arith.constant 1.000000e+00 : f32
    %181 = vector.broadcast %cst_46 : f32 to vector<8x128xf32>
    %182 = arith.addf %181, %180 : vector<8x128xf32>
    %183 = arith.divf %176, %182 : vector<8x128xf32>
    %184 = arith.mulf %183, %183 : vector<8x128xf32>
    %cst_47 = arith.constant 0.111111112 : f32
    %185 = vector.broadcast %cst_47 : f32 to vector<8x128xf32>
    %186 = arith.mulf %184, %185 : vector<8x128xf32>
    %cst_48 = arith.constant -0.142857149 : f32
    %187 = vector.broadcast %cst_48 : f32 to vector<8x128xf32>
    %188 = arith.addf %187, %186 : vector<8x128xf32>
    %189 = arith.mulf %184, %188 : vector<8x128xf32>
    %cst_49 = arith.constant 2.000000e-01 : f32
    %190 = vector.broadcast %cst_49 : f32 to vector<8x128xf32>
    %191 = arith.addf %190, %189 : vector<8x128xf32>
    %192 = arith.mulf %184, %191 : vector<8x128xf32>
    %cst_50 = arith.constant -0.333333343 : f32
    %193 = vector.broadcast %cst_50 : f32 to vector<8x128xf32>
    %194 = arith.addf %193, %192 : vector<8x128xf32>
    %195 = arith.mulf %184, %194 : vector<8x128xf32>
    %cst_51 = arith.constant 1.000000e+00 : f32
    %196 = vector.broadcast %cst_51 : f32 to vector<8x128xf32>
    %197 = arith.addf %196, %195 : vector<8x128xf32>
    %198 = arith.mulf %183, %197 : vector<8x128xf32>
    %cst_52 = arith.constant 1.600000e+01 : f32
    %199 = vector.broadcast %cst_52 : f32 to vector<8x128xf32>
    %200 = arith.mulf %199, %198 : vector<8x128xf32>
    %cst_53 = arith.constant 1.000000e-03 : f32
    %201 = vector.broadcast %cst_53 : f32 to vector<8x128xf32>
    %202 = arith.cmpf ole, %200, %201 : vector<8x128xf32>
    %203 = arith.mulf %200, %200 : vector<8x128xf32>
    %cst_54 = arith.constant 0.0833333358 : f32
    %204 = vector.broadcast %cst_54 : f32 to vector<8x128xf32>
    %205 = arith.mulf %203, %204 : vector<8x128xf32>
    %cst_55 = arith.constant 2.000000e+00 : f32
    %206 = vector.broadcast %cst_55 : f32 to vector<8x128xf32>
    %207 = arith.addf %206, %205 : vector<8x128xf32>
    %208 = arith.mulf %203, %203 : vector<8x128xf32>
    %cst_56 = arith.constant 0.00243055564 : f32
    %209 = vector.broadcast %cst_56 : f32 to vector<8x128xf32>
    %210 = arith.mulf %208, %209 : vector<8x128xf32>
    %211 = arith.addf %207, %210 : vector<8x128xf32>
    %cst_57 = arith.constant 1.000000e+00 : f32
    %212 = vector.broadcast %cst_57 : f32 to vector<8x128xf32>
    %213 = arith.select %202, %212, %166 : vector<8x128xi1>, vector<8x128xf32>
    %214 = arith.divf %200, %213 : vector<8x128xf32>
    %215 = arith.select %202, %211, %214 : vector<8x128xi1>, vector<8x128xf32>
    %216 = arith.mulf %215, %157 : vector<8x128xf32>
    %c0_58 = arith.constant 0 : index
    %c1152 = arith.constant 1152 : index
    %217 = vector.load %arg8[%c0_58, %c1152] : memref<8x1536xf32, #tpu.memory_space<vmem>>, vector<8x128xf32>
    tpu.vector_store %arg8[%c0_58, %c1152], %216 {strides = array<i32>} : memref<8x1536xf32, #tpu.memory_space<vmem>>, vector<8x128xf32>,
    %218 = arith.mulf %215, %158 : vector<8x128xf32>
    %c0_59 = arith.constant 0 : index
    %c1280 = arith.constant 1280 : index
    %219 = vector.load %arg8[%c0_59, %c1280] : memref<8x1536xf32, #tpu.memory_space<vmem>>, vector<8x128xf32>
    tpu.vector_store %arg8[%c0_59, %c1280], %218 {strides = array<i32>} : memref<8x1536xf32, #tpu.memory_space<vmem>>, vector<8x128xf32>,
    %220 = arith.mulf %215, %159 : vector<8x128xf32>
    %c0_60 = arith.constant 0 : index
    %c1408 = arith.constant 1408 : index
    %221 = vector.load %arg8[%c0_60, %c1408] : memref<8x1536xf32, #tpu.memory_space<vmem>>, vector<8x128xf32>
    tpu.vector_store %arg8[%c0_60, %c1408], %220 {strides = array<i32>} : memref<8x1536xf32, #tpu.memory_space<vmem>>, vector<8x128xf32>,
    return
  }
  func.func @transform_0(%arg0: i32) -> (i32, i32) {
    %c0_i32 = arith.constant 0 : i32
    %c0_i32_0 = arith.constant 0 : i32
    return %arg0, %c0_i32 : i32, i32
  }
  func.func @transform_1(%arg0: i32) -> (i32, i32) {
    %c0_i32 = arith.constant 0 : i32
    %c0_i32_0 = arith.constant 0 : i32
    %c0_i32_1 = arith.constant 0 : i32
    return %c0_i32, %c0_i32_0 : i32, i32
  }
  func.func @transform_2(%arg0: i32) -> (i32, i32) {
    %c0_i32 = arith.constant 0 : i32
    %c0_i32_0 = arith.constant 0 : i32
    %c0_i32_1 = arith.constant 0 : i32
    return %c0_i32, %c0_i32_0 : i32, i32
  }
  func.func @transform_3(%arg0: i32) -> (i32, i32) {
    %c0_i32 = arith.constant 0 : i32
    %c0_i32_0 = arith.constant 0 : i32
    %c0_i32_1 = arith.constant 0 : i32
    return %c0_i32, %c0_i32_0 : i32, i32
  }
  func.func @transform_4(%arg0: i32) -> (i32, i32) {
    %c0_i32 = arith.constant 0 : i32
    %c0_i32_0 = arith.constant 0 : i32
    %c0_i32_1 = arith.constant 0 : i32
    return %c0_i32, %c0_i32_0 : i32, i32
  }
  func.func @transform_5(%arg0: i32) -> (i32, i32) {
    %c0_i32 = arith.constant 0 : i32
    %c0_i32_0 = arith.constant 0 : i32
    %c0_i32_1 = arith.constant 0 : i32
    return %c0_i32, %c0_i32_0 : i32, i32
  }
  func.func @transform_6(%arg0: i32) -> (i32, i32) {
    %c0_i32 = arith.constant 0 : i32
    %c0_i32_0 = arith.constant 0 : i32
    %c0_i32_1 = arith.constant 0 : i32
    return %c0_i32, %c0_i32_0 : i32, i32
  }
  func.func @transform_7(%arg0: i32) -> (i32, i32) {
    %c0_i32 = arith.constant 0 : i32
    %c0_i32_0 = arith.constant 0 : i32
    return %arg0, %c0_i32 : i32, i32
  }
}

</mosaic_0001>

<llo_original>
// kernel: pose_decoder_forward.1
$region0: #{pose_decoder_forward.1}
  #allocation0 [shape = 'u32[]', space=smem, size = 0x4, offset = 0x4, fixed_abs, tag = 'smem constant byte address 0x4 - core index']
  #allocation1 [shape = 'u32[144,128]{1,0:T(1,128)}', space=vmem, size = 0x12000, scoped, tag = 'internal scratch']
  %s0 = inlined_call_operand.vmem [shape: f32[8,32], index: 0, kind: input, shape index: {}]
  %s1 = inlined_call_operand.vmem [shape: bf16[32,64], index: 1, kind: input, shape index: {}]
  %s2 = inlined_call_operand.vmem [shape: f32[1,64], index: 2, kind: input, shape index: {}]
  %s3 = inlined_call_operand.hbm [shape: bf16[64,64], index: 3, kind: input, shape index: {}]
  %s4 = inlined_call_operand.vmem [shape: f32[1,64], index: 4, kind: input, shape index: {}]
  %s5 = inlined_call_operand.hbm [shape: bf16[64,768], index: 5, kind: input, shape index: {}]
  %s6 = inlined_call_operand.vmem [shape: f32[1,768], index: 6, kind: input, shape index: {}]
  %s7 = inlined_call_operand.vmem [shape: f32[8,1536], index: 7, kind: output, shape index: {}]
  %s8 = sld [smem:[#allocation0]]
  $region46: #{pose_decoder_forward.1} parent=0
    _
  %s10 = ssub.s32 1, %s8
  %s11 = scalar_select 0, %s10, %s8
  $region1: #{pose_decoder_forward.1} parent=0
    #allocation2 [shape = 'u8[16384]{0}', space=vmem, size = 0x4000, scoped, tag = 'input window, operand 3, single buffered']
    #allocation3 [shape = 's32[1]{0}', space=sflag, size = 0x4, scoped, tag = 'scoped memory for pose_decoder_forward.1']
    #allocation4 [shape = 'u8[98304]{0}', space=vmem, size = 0x18000, scoped, tag = 'input window, operand 5, single buffered']
    #allocation5 [shape = 's32[1]{0}', space=sflag, size = 0x4, scoped, tag = 'scoped memory for pose_decoder_forward.1']
    %12 = vsyncpa [#allocation3], 0
    %13 = vsyncpa [#allocation5], 0
    // Predicated region
    $region2: #{pose_decoder_forward.1} parent=1 // pred_check
      _
    $region3: #{pose_decoder_forward.1} parent=1 // pred_check_branch
      %15 = sbr.rel (0) target = $region5
    $region4: #{pose_decoder_forward.1} parent=1 // pred_region
      _
    $region5: #{pose_decoder_forward.1} parent=1 // pred_fallthru
      _
    // Predicated region
    $region6: #{pose_decoder_forward.1} parent=1 // pred_check
      _
    $region7: #{pose_decoder_forward.1} parent=1 // pred_check_branch
      %17 = sbr.rel (0) target = $region9
    $region8: #{pose_decoder_forward.1} parent=1 // pred_region
      _
    $region9: #{pose_decoder_forward.1} parent=1 // pred_fallthru
      _
    // Predicated region
    $region10: #{pose_decoder_forward.1} parent=1 // pred_check
      _
    $region11: #{pose_decoder_forward.1} parent=1 // pred_check_branch
      %19 = sbr.rel (0) target = $region13
    $region12: #{pose_decoder_forward.1} parent=1 // pred_region
      _
    $region13: #{pose_decoder_forward.1} parent=1 // pred_fallthru
      _
    // Predicated region
    $region14: #{pose_decoder_forward.1} parent=1 // pred_check
      _
    $region15: #{pose_decoder_forward.1} parent=1 // pred_check_branch
      %21 = sbr.rel (0) target = $region17
    $region16: #{pose_decoder_forward.1} parent=1 // pred_region
      %s23 = ssub.s32 512, 512
      %24 = vsyncadd [#allocation3], %s23
      %s25 = sshll.u32 [#allocation2], 4
      %s26 = int_to_ptr.vmem [resolvable:$true] %s25
      %31 = dma.hbm_to_vmem [thread:$0]  %s3, 512, %s26, [#allocation3], 64, 64, 4
    $region17: #{pose_decoder_forward.1} parent=1 // pred_fallthru
      _
    // Predicated region
    $region18: #{pose_decoder_forward.1} parent=1 // pred_check
      _
    $region19: #{pose_decoder_forward.1} parent=1 // pred_check_branch
      %33 = sbr.rel (0) target = $region21
    $region20: #{pose_decoder_forward.1} parent=1 // pred_region
      _
    $region21: #{pose_decoder_forward.1} parent=1 // pred_fallthru
      _
    // Predicated region
    $region22: #{pose_decoder_forward.1} parent=1 // pred_check
      _
    $region23: #{pose_decoder_forward.1} parent=1 // pred_check_branch
      %35 = sbr.rel (0) target = $region25
    $region24: #{pose_decoder_forward.1} parent=1 // pred_region
      %s37 = ssub.s32 3072, 3072
      %38 = vsyncadd [#allocation5], %s37
      %s39 = sshll.u32 [#allocation4], 4
      %s40 = int_to_ptr.vmem [resolvable:$true] %s39
      %45 = dma.hbm_to_vmem [thread:$0]  %s5, 3072, %s40, [#allocation5], 384, 384, 24
    $region25: #{pose_decoder_forward.1} parent=1 // pred_fallthru
      _
    // Predicated region
    $region26: #{pose_decoder_forward.1} parent=1 // pred_check
      _
    $region27: #{pose_decoder_forward.1} parent=1 // pred_check_branch
      %47 = sbr.rel (0) target = $region29
    $region28: #{pose_decoder_forward.1} parent=1 // pred_region
      _
    $region29: #{pose_decoder_forward.1} parent=1 // pred_fallthru
      _
    // Predicated region
    $region30: #{pose_decoder_forward.1} parent=1 // pred_check
      _
    $region31: #{pose_decoder_forward.1} parent=1 // pred_check_branch
      %49 = sbr.rel (0) target = $region33
    $region32: #{pose_decoder_forward.1} parent=1 // pred_region
      %50 = dma.done [#allocation3], 512
    $region33: #{pose_decoder_forward.1} parent=1 // pred_fallthru
      _
    // Predicated region
    $region34: #{pose_decoder_forward.1} parent=1 // pred_check
      _
    $region35: #{pose_decoder_forward.1} parent=1 // pred_check_branch
      %52 = sbr.rel (0) target = $region37
    $region36: #{pose_decoder_forward.1} parent=1 // pred_region
      %53 = dma.done [#allocation5], 3072
    $region37: #{pose_decoder_forward.1} parent=1 // pred_fallthru
      _
    %v55 = vld [vmem:[%s0] sm:$0xff]
    %v56 = vpack.c.bf16 %v55, %v55
    %v57 = vld [vmem:[%s1] sm:$0xf]
    %v58 = vld [vmem:[%s1 + $0x4] sm:$0xf]
    %v59 = vld [vmem:[%s1 + $0x8] sm:$0xf]
    %v60 = vld [vmem:[%s1 + $0xc] sm:$0xf]
    %v61 = vld [vmem:[%s2] sm:$0x1]
    %v63 = vlaneseq
    %v64 = vshrl.u32 %v63, 7
    %v65 = vsub.s32 0, %v64
    %v66 = vrot.slane %v61, %v65
    %v72 = vunpack.c.l.b16 %v57
    %v73 = vunpack.c.l.b16 %v58
    %v74 = vunpack.c.l.b16 %v59
    %v75 = vunpack.c.l.b16 %v60
    %v76 = vpack.c.b16 %v73, %v72
    %v77 = vpack.c.b16 %v75, %v74
    %vm80 = vcmask 261120
    %v82 = vsel %vm80, %v56, 0
    %84 = vmatprep.subr.bf16.mxu0 0
    %85 = vmatpush1.bf16.msra.mxu0 %v76
    %86 = vmatprep.subr.bf16.mxu0 0
    %87 = vmatpush1.bf16.msra.mxu0 %v77
    %88 = vmatprep.subr.bf16.mxu0 0
    %89 = vmatpush1.bf16.msra.mxu0 0
    %90 = vmatprep.subr.bf16.mxu0 0
    %91 = vmatpush1.bf16.msra.mxu0 0
    %92 = vmatprep.subr.bf16.mxu0 0
    %93 = vmatpush1.bf16.msra.mxu0 0
    %94 = vmatprep.subr.bf16.mxu0 0
    %95 = vmatpush1.bf16.msra.mxu0 0
    %96 = vmatprep.subr.bf16.mxu0 0
    %97 = vmatpush1.bf16.msra.mxu0 0
    %98 = vmatprep.subr.bf16.mxu0 0
    %99 = vmatpush1.bf16.msra.mxu0 0
    %100 = vmatprep.subr.bf16.mxu0 0
    %101 = vmatpush1.bf16.msra.mxu0 0
    %102 = vmatprep.subr.bf16.mxu0 0
    %103 = vmatpush1.bf16.msra.mxu0 0
    %104 = vmatprep.subr.bf16.mxu0 0
    %105 = vmatpush1.bf16.msra.mxu0 0
    %106 = vmatprep.subr.bf16.mxu0 0
    %107 = vmatpush1.bf16.msra.mxu0 0
    %108 = vmatprep.subr.bf16.mxu0 0
    %109 = vmatpush1.bf16.msra.mxu0 0
    %110 = vmatprep.subr.bf16.mxu0 0
    %111 = vmatpush1.bf16.msra.mxu0 0
    %112 = vmatprep.subr.bf16.mxu0 0
    %113 = vmatpush1.bf16.msra.mxu0 0
    %114 = vmatprep.subr.bf16.mxu0 0
    %115 = vmatpush1.bf16.msra.mxu0 0
    %116 = vmatprep.mubr.bf16.mxu0 0
    %117 = vmatmul.mubr.bf16.gmra.mrb[0].mxu0 %v82
    %v118 = vpop.f32.mrb[0].mxu0
    %v119 = vadd.f32 %v66, %v118
    %v120 = vpop.f32.mrb[0].mxu0
    %v121 = vpop.f32.mrb[0].mxu0
    %v122 = vpop.f32.mrb[0].mxu0
    %123 = vdwg.mxu0
    %v124 = vmul.f32 %v119, 0.2
    %v125 = vmax.f32 %v119, %v124
    %v126 = vpack.c.bf16 %v125, %v125
    %v127 = vld [vmem:[#allocation2] sm:$0xf]
    %v128 = vld [vmem:[#allocation2 + $0x4] sm:$0xf]
    %v129 = vld [vmem:[#allocation2 + $0x8] sm:$0xf]
    %v130 = vld [vmem:[#allocation2 + $0xc] sm:$0xf]
    %v131 = vld [vmem:[#allocation2 + $0x10] sm:$0xf]
    %v132 = vld [vmem:[#allocation2 + $0x14] sm:$0xf]
    %v133 = vld [vmem:[#allocation2 + $0x18] sm:$0xf]
    %v134 = vld [vmem:[#allocation2 + $0x1c] sm:$0xf]
    %v135 = vld [vmem:[%s4] sm:$0x1]
    %v137 = vlaneseq
    %v138 = vshrl.u32 %v137, 7
    %v139 = vsub.s32 0, %v138
    %v140 = vrot.slane %v135, %v139
    %v150 = vunpack.c.l.b16 %v127
    %v151 = vunpack.c.l.b16 %v128
    %v152 = vunpack.c.l.b16 %v129
    %v153 = vunpack.c.l.b16 %v130
    %v154 = vunpack.c.l.b16 %v131
    %v155 = vunpack.c.l.b16 %v132
    %v156 = vunpack.c.l.b16 %v133
    %v157 = vunpack.c.l.b16 %v134
    %v158 = vpack.c.b16 %v151, %v150
    %v159 = vpack.c.b16 %v153, %v152
    %v160 = vpack.c.b16 %v155, %v154
    %v161 = vpack.c.b16 %v157, %v156
    %vm166 = vcmask 523264
    %v168 = vsel %vm166, %v126, 0
    %170 = vmatprep.subr.bf16.mxu0 0
    %171 = vmatpush1.bf16.msra.mxu0 %v158
    %172 = vmatprep.subr.bf16.mxu0 0
    %173 = vmatpush1.bf16.msra.mxu0 %v159
    %174 = vmatprep.subr.bf16.mxu0 0
    %175 = vmatpush1.bf16.msra.mxu0 %v160
    %176 = vmatprep.subr.bf16.mxu0 0
    %177 = vmatpush1.bf16.msra.mxu0 %v161
    %178 = vmatprep.subr.bf16.mxu0 0
    %179 = vmatpush1.bf16.msra.mxu0 0
    %180 = vmatprep.subr.bf16.mxu0 0
    %181 = vmatpush1.bf16.msra.mxu0 0
    %182 = vmatprep.subr.bf16.mxu0 0
    %183 = vmatpush1.bf16.msra.mxu0 0
    %184 = vmatprep.subr.bf16.mxu0 0
    %185 = vmatpush1.bf16.msra.mxu0 0
    %186 = vmatprep.subr.bf16.mxu0 0
    %187 = vmatpush1.bf16.msra.mxu0 0
    %188 = vmatprep.subr.bf16.mxu0 0
    %189 = vmatpush1.bf16.msra.mxu0 0
    %190 = vmatprep.subr.bf16.mxu0 0
    %191 = vmatpush1.bf16.msra.mxu0 0
    %192 = vmatprep.subr.bf16.mxu0 0
    %193 = vmatpush1.bf16.msra.mxu0 0
    %194 = vmatprep.subr.bf16.mxu0 0
    %195 = vmatpush1.bf16.msra.mxu0 0
    %196 = vmatprep.subr.bf16.mxu0 0
    %197 = vmatpush1.bf16.msra.mxu0 0
    %198 = vmatprep.subr.bf16.mxu0 0
    %199 = vmatpush1.bf16.msra.mxu0 0
    %200 = vmatprep.subr.bf16.mxu0 0
    %201 = vmatpush1.bf16.msra.mxu0 0
    %202 = vmatprep.mubr.bf16.mxu0 0
    %203 = vmatmul.mubr.bf16.gmra.mrb[0].mxu0 %v168
    %v204 = vpop.f32.mrb[0].mxu0
    %v205 = vadd.f32 %v140, %v204
    %v206 = vpop.f32.mrb[0].mxu0
    %v207 = vpop.f32.mrb[0].mxu0
    %v208 = vpop.f32.mrb[0].mxu0
    %209 = vdwg.mxu0
    %v210 = vmul.f32 %v205, 0.2
    %v211 = vmax.f32 %v205, %v210
    %v212 = vpack.c.bf16 %v211, %v211
    %v213 = vld [vmem:[#allocation4] sm:$0xff]
    %v214 = vld [vmem:[#allocation4 + $0x8] sm:$0xff]
    %v215 = vld [vmem:[#allocation4 + $0x10] sm:$0xff]
    %v216 = vld [vmem:[#allocation4 + $0x18] sm:$0xff]
    %v217 = vld [vmem:[#allocation4 + $0x20] sm:$0xff]
    %v218 = vld [vmem:[#allocation4 + $0x28] sm:$0xff]
    %v219 = vld [vmem:[#allocation4 + $0x30] sm:$0xff]
    %v220 = vld [vmem:[#allocation4 + $0x38] sm:$0xff]
    %v221 = vld [vmem:[#allocation4 + $0x40] sm:$0xff]
    %v222 = vld [vmem:[#allocation4 + $0x48] sm:$0xff]
    %v223 = vld [vmem:[#allocation4 + $0x50] sm:$0xff]
    %v224 = vld [vmem:[#allocation4 + $0x58] sm:$0xff]
    %v225 = vld [vmem:[#allocation4 + $0x60] sm:$0xff]
    %v226 = vld [vmem:[#allocation4 + $0x68] sm:$0xff]
    %v227 = vld [vmem:[#allocation4 + $0x70] sm:$0xff]
    %v228 = vld [vmem:[#allocation4 + $0x78] sm:$0xff]
    %v229 = vld [vmem:[#allocation4 + $0x80] sm:$0xff]
    %v230 = vld [vmem:[#allocation4 + $0x88] sm:$0xff]
    %v231 = vld [vmem:[#allocation4 + $0x90] sm:$0xff]
    %v232 = vld [vmem:[#allocation4 + $0x98] sm:$0xff]
    %v233 = vld [vmem:[#allocation4 + $0xa0] sm:$0xff]
    %v234 = vld [vmem:[#allocation4 + $0xa8] sm:$0xff]
    %v235 = vld [vmem:[#allocation4 + $0xb0] sm:$0xff]
    %v236 = vld [vmem:[#allocation4 + $0xb8] sm:$0xff]
    %v237 = vld [vmem:[%s6] sm:$0x3f]
    %v239 = vlaneseq
    %v240 = vshrl.u32 %v239, 7
    %v241 = vsub.s32 0, %v240
    %v242 = vrot.slane %v237, %v241
    %v243 = vlaneseq
    %v244 = vshrl.u32 %v243, 7
    %v245 = vsub.s32 1, %v244
    %v246 = vrot.slane %v237, %v245
    %v247 = vlaneseq
    %v248 = vshrl.u32 %v247, 7
    %v249 = vsub.s32 2, %v248
    %v250 = vrot.slane %v237, %v249
    %v251 = vlaneseq
    %v252 = vshrl.u32 %v251, 7
    %v253 = vsub.s32 3, %v252
    %v254 = vrot.slane %v237, %v253
    %v255 = vlaneseq
    %v256 = vshrl.u32 %v255, 7
    %v257 = vsub.s32 4, %v256
    %v258 = vrot.slane %v237, %v257
    %v259 = vlaneseq
    %v260 = vshrl.u32 %v259, 7
    %v261 = vsub.s32 5, %v260
    %v262 = vrot.slane %v237, %v261
    %v293 = vunpack.c.l.b16 %v213
    %v294 = vunpack.c.h.b16 %v213
    %v295 = vunpack.c.l.b16 %v214
    %v296 = vunpack.c.h.b16 %v214
    %v297 = vunpack.c.l.b16 %v215
    %v298 = vunpack.c.h.b16 %v215
    %v299 = vunpack.c.l.b16 %v216
    %v300 = vunpack.c.h.b16 %v216
    %v301 = vunpack.c.l.b16 %v217
    %v302 = vunpack.c.h.b16 %v217
    %v303 = vunpack.c.l.b16 %v218
    %v304 = vunpack.c.h.b16 %v218
    %v305 = vunpack.c.l.b16 %v219
    %v306 = vunpack.c.h.b16 %v219
    %v307 = vunpack.c.l.b16 %v220
    %v308 = vunpack.c.h.b16 %v220
    %v309 = vunpack.c.l.b16 %v221
    %v310 = vunpack.c.h.b16 %v221
    %v311 = vunpack.c.l.b16 %v222
    %v312 = vunpack.c.h.b16 %v222
    %v313 = vunpack.c.l.b16 %v223
    %v314 = vunpack.c.h.b16 %v223
    %v315 = vunpack.c.l.b16 %v224
    %v316 = vunpack.c.h.b16 %v224
    %v317 = vunpack.c.l.b16 %v225
    %v318 = vunpack.c.h.b16 %v225
    %v319 = vunpack.c.l.b16 %v226
    %v320 = vunpack.c.h.b16 %v226
    %v321 = vunpack.c.l.b16 %v227
    %v322 = vunpack.c.h.b16 %v227
    %v323 = vunpack.c.l.b16 %v228
    %v324 = vunpack.c.h.b16 %v228
    %v325 = vunpack.c.l.b16 %v229
    %v326 = vunpack.c.h.b16 %v229
    %v327 = vunpack.c.l.b16 %v230
    %v328 = vunpack.c.h.b16 %v230
    %v329 = vunpack.c.l.b16 %v231
    %v330 = vunpack.c.h.b16 %v231
    %v331 = vunpack.c.l.b16 %v232
    %v332 = vunpack.c.h.b16 %v232
    %v333 = vunpack.c.l.b16 %v233
    %v334 = vunpack.c.h.b16 %v233
    %v335 = vunpack.c.l.b16 %v234
    %v336 = vunpack.c.h.b16 %v234
    %v337 = vunpack.c.l.b16 %v235
    %v338 = vunpack.c.h.b16 %v235
    %v339 = vunpack.c.l.b16 %v236
    %v340 = vunpack.c.h.b16 %v236
    %v341 = vpack.c.b16 %v299, %v293
    %v342 = vpack.c.b16 %v300, %v294
    %v343 = vpack.c.b16 %v301, %v295
    %v344 = vpack.c.b16 %v302, %v296
    %v345 = vpack.c.b16 %v303, %v297
    %v346 = vpack.c.b16 %v304, %v298
    %v347 = vpack.c.b16 %v311, %v305
    %v348 = vpack.c.b16 %v312, %v306
    %v349 = vpack.c.b16 %v313, %v307
    %v350 = vpack.c.b16 %v314, %v308
    %v351 = vpack.c.b16 %v315, %v309
    %v352 = vpack.c.b16 %v316, %v310
    %v353 = vpack.c.b16 %v323, %v317
    %v354 = vpack.c.b16 %v324, %v318
    %v355 = vpack.c.b16 %v325, %v319
    %v356 = vpack.c.b16 %v326, %v320
    %v357 = vpack.c.b16 %v327, %v321
    %v358 = vpack.c.b16 %v328, %v322
    %v359 = vpack.c.b16 %v335, %v329
    %v360 = vpack.c.b16 %v336, %v330
    %v361 = vpack.c.b16 %v337, %v331
    %v362 = vpack.c.b16 %v338, %v332
    %v363 = vpack.c.b16 %v339, %v333
    %v364 = vpack.c.b16 %v340, %v334
    %v390 = vsel %vm166, %v212, 0
    %392 = vmatprep.subr.bf16.mxu0 %v342
    %393 = vmatpush1.bf16.msra.mxu0 %v341
    %394 = vmatprep.subr.bf16.mxu0 %v348
    %395 = vmatpush1.bf16.msra.mxu0 %v347
    %396 = vmatprep.subr.bf16.mxu0 %v354
    %397 = vmatpush1.bf16.msra.mxu0 %v353
    %398 = vmatprep.subr.bf16.mxu0 %v360
    %399 = vmatpush1.bf16.msra.mxu0 %v359
    %400 = vmatprep.subr.bf16.mxu0 0
    %401 = vmatpush1.bf16.msra.mxu0 0
    %402 = vmatprep.subr.bf16.mxu0 0
    %403 = vmatpush1.bf16.msra.mxu0 0
    %404 = vmatprep.subr.bf16.mxu0 0
    %405 = vmatpush1.bf16.msra.mxu0 0
    %406 = vmatprep.subr.bf16.mxu0 0
    %407 = vmatpush1.bf16.msra.mxu0 0
    %408 = vmatprep.subr.bf16.mxu0 0
    %409 = vmatpush1.bf16.msra.mxu0 0
    %410 = vmatprep.subr.bf16.mxu0 0
    %411 = vmatpush1.bf16.msra.mxu0 0
    %412 = vmatprep.subr.bf16.mxu0 0
    %413 = vmatpush1.bf16.msra.mxu0 0
    %414 = vmatprep.subr.bf16.mxu0 0
    %415 = vmatpush1.bf16.msra.mxu0 0
    %416 = vmatprep.subr.bf16.mxu0 0
    %417 = vmatpush1.bf16.msra.mxu0 0
    %418 = vmatprep.subr.bf16.mxu0 0
    %419 = vmatpush1.bf16.msra.mxu0 0
    %420 = vmatprep.subr.bf16.mxu0 0
    %421 = vmatpush1.bf16.msra.mxu0 0
    %422 = vmatprep.subr.bf16.mxu0 0
    %423 = vmatpush1.bf16.msra.mxu0 0
    %424 = vmatprep.mubr.bf16.mxu0 0
    %425 = vmatmul.mubr.bf16.gmra.mrb[0].mxu0 %v390
    %v426 = vpop.f32.mrb[0].mxu0
    %v427 = vadd.f32 %v242, %v426
    %v428 = vpop.f32.mrb[0].mxu0
    %v429 = vadd.f32 %v246, %v428
    %v430 = vpop.f32.mrb[0].mxu0
    %v431 = vpop.f32.mrb[0].mxu0
    %432 = vdwg.mxu0
    %433 = vmatprep.subr.bf16.mxu0 %v344
    %434 = vmatpush1.bf16.msra.mxu0 %v343
    %435 = vmatprep.subr.bf16.mxu0 %v350
    %436 = vmatpush1.bf16.msra.mxu0 %v349
    %437 = vmatprep.subr.bf16.mxu0 %v356
    %438 = vmatpush1.bf16.msra.mxu0 %v355
    %439 = vmatprep.subr.bf16.mxu0 %v362
    %440 = vmatpush1.bf16.msra.mxu0 %v361
    %441 = vmatprep.subr.bf16.mxu0 0
    %442 = vmatpush1.bf16.msra.mxu0 0
    %443 = vmatprep.subr.bf16.mxu0 0
    %444 = vmatpush1.bf16.msra.mxu0 0
    %445 = vmatprep.subr.bf16.mxu0 0
    %446 = vmatpush1.bf16.msra.mxu0 0
    %447 = vmatprep.subr.bf16.mxu0 0
    %448 = vmatpush1.bf16.msra.mxu0 0
    %449 = vmatprep.subr.bf16.mxu0 0
    %450 = vmatpush1.bf16.msra.mxu0 0
    %451 = vmatprep.subr.bf16.mxu0 0
    %452 = vmatpush1.bf16.msra.mxu0 0
    %453 = vmatprep.subr.bf16.mxu0 0
    %454 = vmatpush1.bf16.msra.mxu0 0
    %455 = vmatprep.subr.bf16.mxu0 0
    %456 = vmatpush1.bf16.msra.mxu0 0
    %457 = vmatprep.subr.bf16.mxu0 0
    %458 = vmatpush1.bf16.msra.mxu0 0
    %459 = vmatprep.subr.bf16.mxu0 0
    %460 = vmatpush1.bf16.msra.mxu0 0
    %461 = vmatprep.subr.bf16.mxu0 0
    %462 = vmatpush1.bf16.msra.mxu0 0
    %463 = vmatprep.subr.bf16.mxu0 0
    %464 = vmatpush1.bf16.msra.mxu0 0
    %465 = vmatprep.mubr.bf16.mxu0 0
    %466 = vmatmul.mubr.bf16.gmra.mrb[0].mxu0 %v390
    %v467 = vpop.f32.mrb[0].mxu0
    %v468 = vadd.f32 %v250, %v467
    %v469 = vpop.f32.mrb[0].mxu0
    %v470 = vadd.f32 %v254, %v469
    %v471 = vpop.f32.mrb[0].mxu0
    %v472 = vpop.f32.mrb[0].mxu0
    %473 = vdwg.mxu0
    %474 = vmatprep.subr.bf16.mxu0 %v346
    %475 = vmatpush1.bf16.msra.mxu0 %v345
    %476 = vmatprep.subr.bf16.mxu0 %v352
    %477 = vmatpush1.bf16.msra.mxu0 %v351
    %478 = vmatprep.subr.bf16.mxu0 %v358
    %479 = vmatpush1.bf16.msra.mxu0 %v357
    %480 = vmatprep.subr.bf16.mxu0 %v364
    %481 = vmatpush1.bf16.msra.mxu0 %v363
    %482 = vmatprep.subr.bf16.mxu0 0
    %483 = vmatpush1.bf16.msra.mxu0 0
    %484 = vmatprep.subr.bf16.mxu0 0
    %485 = vmatpush1.bf16.msra.mxu0 0
    %486 = vmatprep.subr.bf16.mxu0 0
    %487 = vmatpush1.bf16.msra.mxu0 0
    %488 = vmatprep.subr.bf16.mxu0 0
    %489 = vmatpush1.bf16.msra.mxu0 0
    %490 = vmatprep.subr.bf16.mxu0 0
    %491 = vmatpush1.bf16.msra.mxu0 0
    %492 = vmatprep.subr.bf16.mxu0 0
    %493 = vmatpush1.bf16.msra.mxu0 0
    %494 = vmatprep.subr.bf16.mxu0 0
    %495 = vmatpush1.bf16.msra.mxu0 0
    %496 = vmatprep.subr.bf16.mxu0 0
    %497 = vmatpush1.bf16.msra.mxu0 0
    %498 = vmatprep.subr.bf16.mxu0 0
    %499 = vmatpush1.bf16.msra.mxu0 0
    %500 = vmatprep.subr.bf16.mxu0 0
    %501 = vmatpush1.bf16.msra.mxu0 0
    %502 = vmatprep.subr.bf16.mxu0 0
    %503 = vmatpush1.bf16.msra.mxu0 0
    %504 = vmatprep.subr.bf16.mxu0 0
    %505 = vmatpush1.bf16.msra.mxu0 0
    %506 = vmatprep.mubr.bf16.mxu0 0
    %507 = vmatmul.mubr.bf16.gmra.mrb[0].mxu0 %v390
    %v508 = vpop.f32.mrb[0].mxu0
    %v509 = vadd.f32 %v258, %v508
    %v510 = vpop.f32.mrb[0].mxu0
    %v511 = vadd.f32 %v262, %v510
    %v512 = vpop.f32.mrb[0].mxu0
    %v513 = vpop.f32.mrb[0].mxu0
    %514 = vdwg.mxu0
    %v515 = vmul.f32 %v427, %v427
    %v516 = vmul.f32 %v468, %v468
    %v517 = vadd.f32 %v515, %v516
    %v518 = vmul.f32 %v509, %v509
    %v519 = vadd.f32 %v517, %v518
    %v520 = vmax.f32 %v519, 1e-24
    %v521 = vrsqrt.pop %v520
    %v522 = vmul.f32 %v427, %v521
    %v523 = vmul.f32 %v468, %v521
    %v524 = vmul.f32 %v509, %v521
    %v525 = vmul.f32 %v522, %v429
    %v526 = vmul.f32 %v523, %v470
    %v527 = vadd.f32 %v525, %v526
    %v528 = vmul.f32 %v524, %v511
    %v529 = vadd.f32 %v527, %v528
    %v530 = vmul.f32 %v529, %v522
    %v531 = vsub.f32 %v429, %v530
    %v532 = vmul.f32 %v529, %v523
    %v533 = vsub.f32 %v470, %v532
    %v534 = vmul.f32 %v529, %v524
    %v535 = vsub.f32 %v511, %v534
    %v536 = vmul.f32 %v531, %v531
    %v537 = vmul.f32 %v533, %v533
    %v538 = vadd.f32 %v536, %v537
    %v539 = vmul.f32 %v535, %v535
    %v540 = vadd.f32 %v538, %v539
    %v541 = vmax.f32 %v540, 1e-24
    %v542 = vrsqrt.pop %v541
    %v543 = vmul.f32 %v531, %v542
    %v544 = vmul.f32 %v533, %v542
    %v545 = vmul.f32 %v535, %v542
    %v546 = vmul.f32 %v523, %v545
    %v547 = vmul.f32 %v524, %v544
    %v548 = vsub.f32 %v546, %v547
    %v549 = vmul.f32 %v524, %v543
    %v550 = vmul.f32 %v522, %v545
    %v551 = vsub.f32 %v549, %v550
    %v552 = vmul.f32 %v522, %v544
    %v553 = vmul.f32 %v523, %v543
    %v554 = vsub.f32 %v552, %v553
    %555 = vst [vmem:[%s7] sm:$0xff] %v522
    %556 = vst [vmem:[%s7 + $0x8] sm:$0xff] %v543
    %557 = vst [vmem:[%s7 + $0x10] sm:$0xff] %v548
    %558 = vst [vmem:[%s7 + $0x18] sm:$0xff] %v523
    %559 = vst [vmem:[%s7 + $0x20] sm:$0xff] %v544
    %560 = vst [vmem:[%s7 + $0x28] sm:$0xff] %v551
    %561 = vst [vmem:[%s7 + $0x30] sm:$0xff] %v524
    %562 = vst [vmem:[%s7 + $0x38] sm:$0xff] %v545
    %563 = vst [vmem:[%s7 + $0x40] sm:$0xff] %v554
    %v564 = vadd.f32 %v522, %v544
    %v565 = vadd.f32 %v564, %v554
    %vm566 = vcmp.ge.f32.partialorder %v522, %v544
    %vm567 = vcmp.ge.f32.partialorder %v522, %v554
    %vm568 = vmand %vm566, %vm567
    %vm569 = vcmp.ge.f32.partialorder %v522, %v565
    %vm570 = vmand %vm568, %vm569
    %vm571 = vmxor %vm570, 1
    %vm572 = vcmp.ge.f32.partialorder %v544, %v554
    %vm573 = vmand %vm571, %vm572
    %vm574 = vcmp.ge.f32.partialorder %v544, %v565
    %vm575 = vmand %vm573, %vm574
    %vm576 = vmxor %vm575, 1
    %vm577 = vmand %vm571, %vm576
    %vm578 = vcmp.ge.f32.partialorder %v554, %v565
    %vm579 = vmand %vm577, %vm578
    %v580 = vsub.f32 1.0, %v565
    %v581 = vmul.f32 %v522, 2.0
    %v582 = vadd.f32 %v580, %v581
    %v583 = vadd.f32 %v523, %v543
    %v584 = vadd.f32 %v524, %v548
    %v585 = vsub.f32 %v545, %v551
    %v586 = vmul.f32 %v544, 2.0
    %v587 = vadd.f32 %v580, %v586
    %v588 = vadd.f32 %v545, %v551
    %v589 = vsub.f32 %v548, %v524
    %v590 = vmul.f32 %v554, 2.0
    %v591 = vadd.f32 %v580, %v590
    %v592 = vsub.f32 %v523, %v543
    %v593 = vadd.f32 %v565, 1.0
    %v594 = vsel %vm579, %v584, %v585
    %v595 = vsel %vm575, %v583, %v594
    %v596 = vsel %vm570, %v582, %v595
    %v597 = vsel %vm579, %v588, %v589
    %v598 = vsel %vm575, %v587, %v597
    %v599 = vsel %vm570, %v583, %v598
    %v600 = vsel %vm579, %v591, %v592
    %v601 = vsel %vm575, %v588, %v600
    %v602 = vsel %vm570, %v584, %v601
    %v603 = vsel %vm579, %v592, %v593
    %v604 = vsel %vm575, %v589, %v603
    %v605 = vsel %vm570, %v585, %v604
    %v606 = vmul.f32 %v596, %v596
    %v607 = vmul.f32 %v599, %v599
    %v608 = vadd.f32 %v606, %v607
    %v609 = vmul.f32 %v602, %v602
    %v610 = vadd.f32 %v608, %v609
    %v611 = vmul.f32 %v605, %v605
    %v612 = vadd.f32 %v610, %v611
    %v613 = vrsqrt.pop %v612
    %v614 = vmul.f32 %v596, %v613
    %v615 = vmul.f32 %v599, %v613
    %v616 = vmul.f32 %v602, %v613
    %v617 = vmul.f32 %v605, %v613
    %vm618 = vcmp.lt.f32.partialorder %v617, 0.0
    %v619 = vsel %vm618, -1.0, 1.0
    %v620 = vmul.f32 %v614, %v619
    %v621 = vmul.f32 %v615, %v619
    %v622 = vmul.f32 %v616, %v619
    %v623 = vmul.f32 %v617, %v619
    %v624 = vmul.f32 %v620, %v620
    %v625 = vmul.f32 %v621, %v621
    %v626 = vadd.f32 %v624, %v625
    %v627 = vmul.f32 %v622, %v622
    %v628 = vadd.f32 %v626, %v627
    %v629 = vrsqrt.pop %v628
    %v630 = vmul.f32 %v628, %v629
    %vm631 = vcmp.eq.f32.partialorder %v628, inf
    %v632 = vsel %vm631, %v628, %v630
    %vm633 = vcmp.eq.f32.partialorder %v628, 0.0
    %v634 = vand.u32 %v628, 2147483648
    %v635 = vsel %vm633, %v634, %v632
    %v636 = vadd.f32 %v623, 1.0
    %v637 = vrcp.pop %v636
    %v638 = vmul.f32 %v635, %v637
    %v639 = vmul.f32 %v638, %v638
    %v640 = vadd.f32 %v639, 1.0
    %v641 = vrsqrt.pop %v640
    %v642 = vmul.f32 %v640, %v641
    %vm643 = vcmp.eq.f32.partialorder %v640, inf
    %v644 = vsel %vm643, %v640, %v642
    %vm645 = vcmp.eq.f32.partialorder %v640, 0.0
    %v646 = vand.u32 %v640, 2147483648
    %v647 = vsel %vm645, %v646, %v644
    %v648 = vadd.f32 %v647, 1.0
    %v649 = vrcp.pop %v648
    %v650 = vmul.f32 %v638, %v649
    %v651 = vmul.f32 %v650, %v650
    %v652 = vadd.f32 %v651, 1.0
    %v653 = vrsqrt.pop %v652
    %v654 = vmul.f32 %v652, %v653
    %vm655 = vcmp.eq.f32.partialorder %v652, inf
    %v656 = vsel %vm655, %v652, %v654
    %vm657 = vcmp.eq.f32.partialorder %v652, 0.0
    %v658 = vand.u32 %v652, 2147483648
    %v659 = vsel %vm657, %v658, %v656
    %v660 = vadd.f32 %v659, 1.0
    %v661 = vrcp.pop %v660
    %v662 = vmul.f32 %v650, %v661
    %v663 = vmul.f32 %v662, %v662
    %v664 = vmul.f32 %v663, 0.11111111
    %v665 = vadd.f32 %v664, -0.14285715
    %v666 = vmul.f32 %v663, %v665
    %v667 = vadd.f32 %v666, 0.2
    %v668 = vmul.f32 %v663, %v667
    %v669 = vadd.f32 %v668, -0.33333334
    %v670 = vmul.f32 %v663, %v669
    %v671 = vadd.f32 %v670, 1.0
    %v672 = vmul.f32 %v662, %v671
    %v673 = vmul.f32 %v672, 16.0
    %vm674 = vcmp.le.f32.partialorder %v673, 0.001
    %v675 = vmul.f32 %v673, %v673
    %v676 = vmul.f32 %v675, 0.083333336
    %v677 = vadd.f32 %v676, 2.0
    %v678 = vmul.f32 %v675, %v675
    %v679 = vmul.f32 %v678, 0.0024305556
    %v680 = vadd.f32 %v677, %v679
    %v681 = vsel %vm674, 1.0, %v635
    %v682 = vrcp.pop %v681
    %v683 = vmul.f32 %v673, %v682
    %v684 = vsel %vm674, %v680, %v683
    %v685 = vmul.f32 %v684, %v620
    %686 = vst [vmem:[%s7 + $0x48] sm:$0xff] %v685
    %v687 = vmul.f32 %v684, %v621
    %688 = vst [vmem:[%s7 + $0x50] sm:$0xff] %v687
    %v689 = vmul.f32 %v684, %v622
    %690 = vst [vmem:[%s7 + $0x58] sm:$0xff] %v689
    // Predicated region
    $region38: #{pose_decoder_forward.1} parent=1 // pred_check
      _
    $region39: #{pose_decoder_forward.1} parent=1 // pred_check_branch
      %692 = sbr.rel (0) target = $region41
    $region40: #{pose_decoder_forward.1} parent=1 // pred_region
      _
    $region41: #{pose_decoder_forward.1} parent=1 // pred_fallthru
      _
    // Predicated region
    $region42: #{pose_decoder_forward.1} parent=1 // pred_check
      _
    $region43: #{pose_decoder_forward.1} parent=1 // pred_check_branch
      %694 = sbr.rel (0) target = $region45
    $region44: #{pose_decoder_forward.1} parent=1 // pred_region
      _
    $region45: #{pose_decoder_forward.1} parent=1 // pred_fallthru
      _
    %695 = vsyncpa [#allocation3], 1
    %696 = vsyncpa [#allocation5], 1

</llo_original>
